<compile_context>
chip_gen: v5e
topology: v5e:2x2
jax: 0.10.0
libtpu: 0.0.40
codegen_flags: <defaults>
</compile_context>

<pallas_src>
import math

import jax
import jax.numpy as jnp
from jax.experimental import pallas as pl
from jax.experimental.pallas import tpu as pltpu


# ----------------------------------------------------------------------------
# Schedule construction (plain JAX glue, mirrors _cosine_variance_schedule)
# ----------------------------------------------------------------------------
def cosine_variance_schedule(timesteps: int, epsilon: float = 0.008) -> jnp.ndarray:
    steps = jnp.linspace(0.0, timesteps, timesteps + 1, dtype=jnp.float32)
    f_t = jnp.cos((steps / timesteps + epsilon) / (1.0 + epsilon) * math.pi * 0.5) ** 2
    betas = jnp.clip(1.0 - f_t[1:] / f_t[:timesteps], 0.0, 0.999)
    return betas


def _round_up(x: int, m: int) -> int:
    return ((x + m - 1) // m) * m


# ----------------------------------------------------------------------------
# Pallas kernel: forward diffusion as a lane-dense broadcast FMA
#   o[r, :] = scale_a[r] * x[r, :] + scale_n[r] * noise[r, :]
# ----------------------------------------------------------------------------
def _forward_diffusion_kernel(x_ref,    # VMEM (TB, Dp)  input dtype
                              n_ref,    # VMEM (TB, Dp)  input dtype
                              sa_ref,   # VMEM (TB, 1)   f32
                              sn_ref,   # VMEM (TB, 1)   f32
                              o_ref):   # VMEM (TB, Dp)  input dtype
    x = x_ref[...].astype(jnp.float32)
    n = n_ref[...].astype(jnp.float32)
    o_ref[...] = (sa_ref[...] * x + sn_ref[...] * n).astype(o_ref.dtype)


def forward_diffusion_pallas(x0, noise, scale_a, scale_n, *, max_block_rows=512):
    """q_t = scale_a[b] * x0[b] + scale_n[b] * noise[b], per sample b."""
    B, C, L = x0.shape
    D = C * L
    Dp = _round_up(D, 128)                      # lane-dense last dim
    itemsize = jnp.dtype(x0.dtype).itemsize

    # Row-block size: as many rows as reasonable, but keep each input block at
    # <= ~2 MiB so (2 in + 1 out) x double-buffering stays far below the
    # default scoped-VMEM limit on every generation (v7x has 64 MiB total).
    vmem_cap_rows = max(8, (2 * 1024 * 1024) // max(1, Dp * itemsize))
    TB = min(max_block_rows, _round_up(B, 8), max(8, (vmem_cap_rows // 8) * 8))
    Bp = _round_up(B, TB)

    # Flatten to 2-D and zero-pad to (Bp, Dp); padded rows get zero scales.
    x2 = x0.reshape(B, D)
    n2 = noise.reshape(B, D)
    if (Bp, Dp) != (B, D):
        x2 = jnp.pad(x2, ((0, Bp - B), (0, Dp - D)))
        n2 = jnp.pad(n2, ((0, Bp - B), (0, Dp - D)))
    sa = scale_a.astype(jnp.float32).reshape(B, 1)
    sn = scale_n.astype(jnp.float32).reshape(B, 1)
    if Bp != B:
        sa = jnp.pad(sa, ((0, Bp - B), (0, 0)))
        sn = jnp.pad(sn, ((0, Bp - B), (0, 0)))

    out = pl.pallas_call(
        _forward_diffusion_kernel,
        out_shape=jax.ShapeDtypeStruct((Bp, Dp), x0.dtype),
        grid=(Bp // TB,),
        in_specs=[
            pl.BlockSpec((TB, Dp), lambda i: (i, 0)),   # x
            pl.BlockSpec((TB, Dp), lambda i: (i, 0)),   # noise
            pl.BlockSpec((TB, 1), lambda i: (i, 0)),    # scale_a (per-row)
            pl.BlockSpec((TB, 1), lambda i: (i, 0)),    # scale_n (per-row)
        ],
        out_specs=pl.BlockSpec((TB, Dp), lambda i: (i, 0)),
        compiler_params=pltpu.CompilerParams(
            dimension_semantics=("parallel",)),         # shard rows across TCs (v7x)
    )(x2, n2, sa, sn)

    return out[:B, :D].reshape(B, C, L)


# ----------------------------------------------------------------------------
# AirfoilDiffusion (JAX/Pallas)
# ----------------------------------------------------------------------------
class AirfoilDiffusionPallas:
    def __init__(self, model, latent_size, in_channels, out_channels,
                 time_embedding_dim=256, timesteps=1000, base_dim=32,
                 dim_mults=(1, 2, 4, 8)):
        self.latent_size = latent_size
        self.in_channels = in_channels
        self.timesteps = timesteps

        self.beta = cosine_variance_schedule(timesteps)
        self.alpha = 1.0 - self.beta
        self.alpha_bar = jnp.cumprod(self.alpha, axis=-1)
        self.alpha_prev_bar = jnp.concatenate(
            [jnp.ones((1,), jnp.float32), self.alpha_bar[:-1]], axis=0)
        self.sqrt_alpha_bar = jnp.sqrt(self.alpha_bar)
        self.sqrt_one_minus_alpha_bar = jnp.sqrt(1.0 - self.alpha_bar)

        # `model` is an externally injected denoiser in the PyTorch module.
        self.model = model

        # cond_embedder = nn.Linear(37, 2): deterministic init (unused in
        # forward, kept for parameter parity with the PyTorch __init__).
        k1, k2 = jax.random.split(jax.random.PRNGKey(42))
        bound = 1.0 / math.sqrt(37.0)
        self.cond_embedder_w = jax.random.uniform(k1, (2, 37), jnp.float32, -bound, bound)
        self.cond_embedder_b = jax.random.uniform(k2, (2,), jnp.float32, -bound, bound)

    def forward(self, x, noise, y1, y2, reduced_cond, *, time_key):
        cond = jnp.concatenate((y1, y2), axis=-1)
        # torch.randint(0, timesteps, (B,)) -> deterministic JAX equivalent.
        target_time = jax.random.randint(
            time_key, (x.shape[0],), 0, self.timesteps, dtype=jnp.int32)

        # Cheap (B,)-sized precompute in plain JAX: fold the schedule gather
        # and (1 + 0.1*Cl/Cd) conditioning into two per-sample scales.
        cl = reduced_cond[:, 0].astype(jnp.float32)
        cd = reduced_cond[:, 1].astype(jnp.float32)
        scale_a = self.sqrt_alpha_bar[target_time] * (1.0 + 0.1 * cl)
        scale_n = self.sqrt_one_minus_alpha_bar[target_time] * (1.0 + 0.1 * cd)

        x_t = forward_diffusion_pallas(x, noise, scale_a, scale_n)
        pred = self.model(x_t, target_time, cond)
        return pred, target_time, x_t


# TODO(synk): `self.model` is an externally injected denoiser (UNet); it is not
# part of this module, so an identity stand-in is used here.
def identity_denoiser(x_t, t, cond):
    return x_t


# ----------------------------------------------------------------------------
# Demo / self-check
# ----------------------------------------------------------------------------
if __name__ == "__main__":
    B, C, L = 2, 4, 16          # batch, in_channels, latent_size
    T = 1000

    key = jax.random.PRNGKey(0)
    kx, kn, ky1, ky2, kc, kt = jax.random.split(key, 6)
    x = jax.random.normal(kx, (B, C, L), jnp.float32)
    noise = jax.random.normal(kn, (B, C, L), jnp.float32)
    y1 = jax.random.normal(ky1, (B, 1), jnp.float32)
    y2 = jax.random.normal(ky2, (B, 1), jnp.float32)
    reduced_cond = jax.random.normal(kc, (B, 2), jnp.float32)

    module = AirfoilDiffusionPallas(
        model=identity_denoiser, latent_size=L, in_channels=C, out_channels=C,
        timesteps=T)

    pred, t_used, x_t = module.forward(
        x, noise, y1, y2, reduced_cond, time_key=kt)
    pred = jax.block_until_ready(pred)

    # Pure-JAX reference for the forward-diffusion hot path (PyTorch order).
    Cl = reduced_cond[:, 0][:, None, None]
    Cd = reduced_cond[:, 1][:, None, None]
    a = module.sqrt_alpha_bar[t_used][:, None, None]
    oma = module.sqrt_one_minus_alpha_bar[t_used][:, None, None]
    q_ref = a * x * (1.0 + 0.1 * Cl) + oma * noise * (1.0 + 0.1 * Cd)

    assert pred.shape == (B, C, L)
    assert x_t.dtype == x.dtype
    assert jnp.allclose(x_t, q_ref, atol=1e-5, rtol=1e-5)
    assert jnp.allclose(pred, q_ref, atol=1e-5, rtol=1e-5)  # identity denoiser

    print("KERNEL_OK")
</pallas_src>

<mosaic_0001>
module attributes {stable_mosaic.version = 11 : i64} {
  func.func @_forward_diffusion_kernel(%arg0: i32, %arg1: memref<8x128xf32, #tpu.memory_space<vmem>>, %arg2: memref<8x128xf32, #tpu.memory_space<vmem>>, %arg3: memref<8x1xf32, #tpu.memory_space<vmem>>, %arg4: memref<8x1xf32, #tpu.memory_space<vmem>>, %arg5: memref<8x128xf32, #tpu.memory_space<vmem>>) attributes {dimension_semantics = [#tpu.dimension_semantics<parallel>], iteration_bounds = array<i64: 1>, scalar_prefetch = 0 : i64, scratch_operands = 0 : i64, tpu.core_type = #tpu.core_type<tc>, window_params = [{transform_indices = @transform_0, window_bounds = array<i64: 8, 128>}, {transform_indices = @transform_1, window_bounds = array<i64: 8, 128>}, {transform_indices = @transform_2, window_bounds = array<i64: 8, 1>}, {transform_indices = @transform_3, window_bounds = array<i64: 8, 1>}, {transform_indices = @transform_4, window_bounds = array<i64: 8, 128>}]} {
    %c0 = arith.constant 0 : index
    %c0_0 = arith.constant 0 : index
    %0 = vector.load %arg1[%c0, %c0_0] : memref<8x128xf32, #tpu.memory_space<vmem>>, vector<8x128xf32>
    %c0_1 = arith.constant 0 : index
    %c0_2 = arith.constant 0 : index
    %1 = vector.load %arg2[%c0_1, %c0_2] : memref<8x128xf32, #tpu.memory_space<vmem>>, vector<8x128xf32>
    %c0_3 = arith.constant 0 : index
    %c0_4 = arith.constant 0 : index
    %2 = vector.load %arg3[%c0_3, %c0_4] : memref<8x1xf32, #tpu.memory_space<vmem>>, vector<8x1xf32>
    %3 = vector.broadcast %2 : vector<8x1xf32> to vector<8x128xf32>
    %4 = arith.mulf %3, %0 : vector<8x128xf32>
    %c0_5 = arith.constant 0 : index
    %c0_6 = arith.constant 0 : index
    %5 = vector.load %arg4[%c0_5, %c0_6] : memref<8x1xf32, #tpu.memory_space<vmem>>, vector<8x1xf32>
    %6 = vector.broadcast %5 : vector<8x1xf32> to vector<8x128xf32>
    %7 = arith.mulf %6, %1 : vector<8x128xf32>
    %8 = arith.addf %4, %7 : vector<8x128xf32>
    %c0_7 = arith.constant 0 : index
    %c0_8 = arith.constant 0 : index
    %9 = vector.load %arg5[%c0_7, %c0_8] : memref<8x128xf32, #tpu.memory_space<vmem>>, vector<8x128xf32>
    tpu.vector_store %arg5[%c0_7, %c0_8], %8 {strides = array<i32>} : memref<8x128xf32, #tpu.memory_space<vmem>>, vector<8x128xf32>,
    return
  }
  func.func @transform_0(%arg0: i32) -> (i32, i32) {
    %c0_i32 = arith.constant 0 : i32
    %c0_i32_0 = arith.constant 0 : i32
    return %arg0, %c0_i32 : i32, i32
  }
  func.func @transform_1(%arg0: i32) -> (i32, i32) {
    %c0_i32 = arith.constant 0 : i32
    %c0_i32_0 = arith.constant 0 : i32
    return %arg0, %c0_i32 : i32, i32
  }
  func.func @transform_2(%arg0: i32) -> (i32, i32) {
    %c0_i32 = arith.constant 0 : i32
    %c0_i32_0 = arith.constant 0 : i32
    return %arg0, %c0_i32 : i32, i32
  }
  func.func @transform_3(%arg0: i32) -> (i32, i32) {
    %c0_i32 = arith.constant 0 : i32
    %c0_i32_0 = arith.constant 0 : i32
    return %arg0, %c0_i32 : i32, i32
  }
  func.func @transform_4(%arg0: i32) -> (i32, i32) {
    %c0_i32 = arith.constant 0 : i32
    %c0_i32_0 = arith.constant 0 : i32
    return %arg0, %c0_i32 : i32, i32
  }
}

</mosaic_0001>

<llo_original>
// kernel: tpu_custom_call.1
$region0: #{tpu_custom_call.1}
  #allocation0 [shape = 'u32[]', space=smem, size = 0x4, offset = 0x4, fixed_abs, tag = 'smem constant byte address 0x4 - core index']
  #allocation1 [shape = 'u32[72,128]{1,0:T(1,128)}', space=vmem, size = 0x9000, scoped, tag = 'internal scratch']
  %s0 = inlined_call_operand.vmem [shape: f32[8,128], index: 0, kind: input, shape index: {}]
  %s1 = inlined_call_operand.vmem [shape: f32[8,128], index: 1, kind: input, shape index: {}]
  %s2 = inlined_call_operand.vmem [shape: f32[8,1], index: 2, kind: input, shape index: {}]
  %s3 = inlined_call_operand.vmem [shape: f32[8,1], index: 3, kind: input, shape index: {}]
  %s4 = inlined_call_operand.hbm [shape: f32[8,128], index: 4, kind: output, shape index: {}]
  %s5 = sld [smem:[#allocation0]]
  $region26: #{tpu_custom_call.1} parent=0
    _
  %s7 = ssub.s32 1, %s5
  %s8 = scalar_select 0, %s7, %s5
  $region1: #{tpu_custom_call.1} parent=0
    #allocation2 [shape = 'u8[4096]{0}', space=vmem, size = 0x1000, scoped, tag = 'output window, operand 0, single buffered']
    #allocation3 [shape = 's32[1]{0}', space=sflag, size = 0x4, scoped, tag = 'scoped memory for tpu_custom_call.1']
    %9 = vsyncpa [#allocation3], 0
    // Predicated region
    $region2: #{tpu_custom_call.1} parent=1 // pred_check
      _
    $region3: #{tpu_custom_call.1} parent=1 // pred_check_branch
      %11 = sbr.rel (0) target = $region5
    $region4: #{tpu_custom_call.1} parent=1 // pred_region
      _
    $region5: #{tpu_custom_call.1} parent=1 // pred_fallthru
      _
    // Predicated region
    $region6: #{tpu_custom_call.1} parent=1 // pred_check
      _
    $region7: #{tpu_custom_call.1} parent=1 // pred_check_branch
      %13 = sbr.rel (0) target = $region9
    $region8: #{tpu_custom_call.1} parent=1 // pred_region
      _
    $region9: #{tpu_custom_call.1} parent=1 // pred_fallthru
      _
    // Predicated region
    $region10: #{tpu_custom_call.1} parent=1 // pred_check
      _
    $region11: #{tpu_custom_call.1} parent=1 // pred_check_branch
      %15 = sbr.rel (0) target = $region13
    $region12: #{tpu_custom_call.1} parent=1 // pred_region
      _
    $region13: #{tpu_custom_call.1} parent=1 // pred_fallthru
      _
    // Predicated region
    $region14: #{tpu_custom_call.1} parent=1 // pred_check
      _
    $region15: #{tpu_custom_call.1} parent=1 // pred_check_branch
      %17 = sbr.rel (0) target = $region17
    $region16: #{tpu_custom_call.1} parent=1 // pred_region
      _
    $region17: #{tpu_custom_call.1} parent=1 // pred_fallthru
      _
    %v18 = vld [vmem:[%s0] sm:$0xff]
    %v19 = vld [vmem:[%s1] sm:$0xff]
    %v20 = vld [vmem:[%s2] sm:$0xff]
    %22 = vset.pattern.permute.xlu0 0
    %23 = vperm.xlu0 %22, %v20
    %v24 = vpop.permute.xlu0 %23
    %v26 = vmul.f32 %v24, %v18
    %v27 = vld [vmem:[%s3] sm:$0xff]
    %29 = vset.pattern.permute.xlu0 0
    %30 = vperm.xlu0 %29, %v27
    %v31 = vpop.permute.xlu0 %30
    %v33 = vmul.f32 %v31, %v19
    %v34 = vadd.f32 %v26, %v33
    %35 = vst [vmem:[#allocation2] sm:$0xff] %v34
    // Predicated region
    $region18: #{tpu_custom_call.1} parent=1 // pred_check
      _
    $region19: #{tpu_custom_call.1} parent=1 // pred_check_branch
      %37 = sbr.rel (0) target = $region21
    $region20: #{tpu_custom_call.1} parent=1 // pred_region
      %39 = vsyncadd [#allocation3], 0
      %s41 = sshll.u32 [#allocation2], 4
      %s42 = int_to_ptr.vmem [resolvable:$true] %s41
      %s43 = sshll.u32 %s4, 4
      %s44 = int_to_ptr.hbm [resolvable:$true] %s43
      %46 = dma.vmem_to_hbm [thread:$0]  %s42, 128, %s44, [#allocation3]
    $region21: #{tpu_custom_call.1} parent=1 // pred_fallthru
      _
    // Predicated region
    $region22: #{tpu_custom_call.1} parent=1 // pred_check
      _
    $region23: #{tpu_custom_call.1} parent=1 // pred_check_branch
      %48 = sbr.rel (0) target = $region25
    $region24: #{tpu_custom_call.1} parent=1 // pred_region
      %50 = dma.done [#allocation3], 128
    $region25: #{tpu_custom_call.1} parent=1 // pred_fallthru
      _
    %51 = vsyncpa [#allocation3], 1

</llo_original>
